<compile_context>
chip_gen: v7x
topology: tpu7x:2x2x1
jax: 0.10.0
libtpu: 0.0.40
codegen_flags: <defaults>
</compile_context>

<pallas_src>
import jax
import jax.numpy as jnp
from jax import lax
from jax.experimental import pallas as pl
from jax.experimental.pallas import tpu as pltpu


def _round_up(n, m):
    return ((n + m - 1) // m) * m


def _make_rnn_kernel(Tc, T_valid, n_chunks, out_dtype):
    """Per-chunk recurrence kernel with a fused fc head (shapes static)."""
    needs_mask = (n_chunks * Tc != T_valid)

    def kernel(xw_ref, whh_ref, wfc_ref, bfc_ref, out_ref, h_scr):
        # xw_ref : (Tc, B, Hp) f32   time-major input projection chunk (streamed)
        # whh_ref: (Hp, Hp)    bf16  W_hh^T (lane-padded)
        # wfc_ref: (Hp, O)     f32   W_fc^T (row-padded)
        # bfc_ref: (1, O)      f32   fc bias
        # out_ref: (B, O)            final output (written on last chunk only)
        # h_scr  : (B, Hp)     f32   hidden-state carry (persists across chunks)
        c = pl.program_id(0)

        # Zero hidden state at the first chunk (init_zero_hidden equivalent).
        @pl.when(c == 0)
        def _():
            h_scr[...] = jnp.zeros_like(h_scr)

        whh = whh_ref[...]
        t0 = c * Tc

        def step(i, h):
            # Only h @ W_hh^T + tanh sits on the serial dependent chain.
            pre = xw_ref[i] + jnp.dot(
                h.astype(whh.dtype), whh, preferred_element_type=jnp.float32
            )
            h_new = jnp.tanh(pre)
            if needs_mask:
                # Padded tail timesteps must not update the hidden state.
                h_new = jnp.where(t0 + i < T_valid, h_new, h)
            return h_new

        h = h_scr[...]
        if Tc <= 64:
            # Short static trip count: full unroll (best LLO scheduling).
            for i in range(Tc):
                h = step(i, h)
        else:
            # Larger chunks: partial unroll caps icache / vreg pressure.
            h = lax.fori_loop(0, Tc, step, h, unroll=8)
        h_scr[...] = h

        # Fused fc head on the final chunk: out = tanh(h @ W_fc^T + b_fc).
        @pl.when(c == n_chunks - 1)
        def _():
            out_ref[...] = jnp.tanh(
                jnp.dot(h, wfc_ref[...], preferred_element_type=jnp.float32)
                + bfc_ref[...]
            ).astype(out_dtype)

    return kernel


def vanilla_rnn_forward(x, params, *, time_chunk=64, mxu_bf16=True):
    """x: (B, T, input_dim). Returns (B, output_dim) float32."""
    assert x.ndim == 3, f"Expected input to be 3-dim, got {x.ndim}"
    B, T, D = x.shape
    H = params["w_ih"].shape[0]
    O = params["w_fc"].shape[0]
    Hp = _round_up(H, 128)  # lane-dense hidden dim; padded columns stay 0

    f32 = jnp.float32
    x = x.astype(f32)

    # Weight prep (zero-padded to Hp so h / xw are lane-dense).
    wih_t = jnp.zeros((D, Hp), f32).at[:, :H].set(params["w_ih"].T.astype(f32))
    whh_t = jnp.zeros((Hp, Hp), f32).at[:H, :H].set(params["w_hh"].T.astype(f32))
    wfc_t = jnp.zeros((Hp, O), f32).at[:H, :].set(params["w_fc"].T.astype(f32))
    b_rnn = jnp.zeros((Hp,), f32).at[:H].set(
        (params["b_ih"] + params["b_hh"]).astype(f32))
    b_fc = params["b_fc"].reshape(1, O).astype(f32)
    whh_mxu = whh_t.astype(jnp.bfloat16) if mxu_bf16 else whh_t

    # Hoisted, fully-parallel input projection (one XLA GEMM), produced
    # time-major so the kernel streams (Tc, B, Hp) slabs straight into the
    # serial recurrence; b_ih + b_hh fused here.
    xw = jnp.einsum("btd,dh->tbh", x, wih_t) + b_rnn[None, None, :]  # (T, B, Hp)

    # Balanced time chunks, clamped to a conservative VMEM budget (covers
    # v5e's 16 MiB scoped default; v6e/v7x have more headroom).
    budget = 8 << 20
    max_tc = max(1, budget // (2 * B * Hp * 4))     # double-buffered xw chunk
    tc_cap = max(1, min(int(time_chunk), max_tc))
    n_chunks = pl.cdiv(T, tc_cap)
    Tc = pl.cdiv(T, n_chunks)
    T_pad = n_chunks * Tc
    if T_pad != T:
        xw = jnp.pad(xw, ((0, T_pad - T), (0, 0), (0, 0)))

    kernel = _make_rnn_kernel(Tc, T, n_chunks, jnp.float32)

    return pl.pallas_call(
        kernel,
        out_shape=jax.ShapeDtypeStruct((B, O), jnp.float32),
        grid_spec=pltpu.PrefetchScalarGridSpec(
            num_scalar_prefetch=0,
            grid=(n_chunks,),
            in_specs=[
                pl.BlockSpec((Tc, B, Hp), lambda c: (c, 0, 0)),  # xw chunk
                pl.BlockSpec((Hp, Hp), lambda c: (0, 0)),        # W_hh^T
                pl.BlockSpec((Hp, O), lambda c: (0, 0)),         # W_fc^T
                pl.BlockSpec((1, O), lambda c: (0, 0)),          # b_fc
            ],
            out_specs=pl.BlockSpec((B, O), lambda c: (0, 0)),
            scratch_shapes=[pltpu.VMEM((B, Hp), jnp.float32)],   # h carry
        ),
        compiler_params=pltpu.CompilerParams(
            dimension_semantics=("arbitrary",),  # sequential recurrence
        ),
    )(xw, whh_mxu, wfc_t, b_fc)


def init_params(key, input_dim, hidden_dim, output_dim):
    # Mirrors VanillaRNN.init_weights(): RNN params and fc.weight ~ N(0,1);
    # fc.bias drawn as well (synthetic weights).
    k = jax.random.split(key, 6)
    return {
        "w_ih": jax.random.normal(k[0], (hidden_dim, input_dim), jnp.float32),
        "w_hh": jax.random.normal(k[1], (hidden_dim, hidden_dim), jnp.float32),
        "b_ih": jax.random.normal(k[2], (hidden_dim,), jnp.float32),
        "b_hh": jax.random.normal(k[3], (hidden_dim,), jnp.float32),
        "w_fc": jax.random.normal(k[4], (output_dim, hidden_dim), jnp.float32),
        "b_fc": jax.random.normal(k[5], (output_dim,), jnp.float32),
    }


def _reference(x, params):
    """Pure-JAX reference of the same forward pass (for sanity checking)."""
    B, T, D = x.shape
    H = params["w_ih"].shape[0]
    h = jnp.zeros((B, H), jnp.float32)
    for t in range(T):
        h = jnp.tanh(
            x[:, t, :] @ params["w_ih"].T + params["b_ih"]
            + h @ params["w_hh"].T + params["b_hh"]
        )
    return jnp.tanh(h @ params["w_fc"].T + params["b_fc"])


if __name__ == "__main__":
    key = jax.random.PRNGKey(0)
    kx1, kx2, kp = jax.random.split(key, 3)

    D, H, O = 16, 32, 8
    params = init_params(kp, D, H, O)

    # For the numerical self-check only, scale the N(0,1) init down: with raw
    # N(0,1) recurrent weights the RNN is chaotic (per-step error growth > 1),
    # so ANY reduced-precision matmul path (including XLA's own default f32
    # MXU handling) decorrelates trajectories over tens of steps and no finite
    # tolerance is meaningful. The kernel itself is init-agnostic.
    check = {k: v * 0.125 for k, v in params.items()}

    # Case 1: small spec-sized shapes (single time chunk, no masking).
    x1 = jax.random.normal(kx1, (2, 8, D), jnp.float32)
    out1 = jax.block_until_ready(vanilla_rnn_forward(x1, check))
    ref1 = _reference(x1, check)
    assert out1.shape == (2, O), out1.shape
    assert jnp.allclose(out1, ref1, atol=3e-2, rtol=3e-2), (
        "mismatch (case 1), max err "
        f"{float(jnp.max(jnp.abs(out1 - ref1)))}")

    # Case 2: longer sequence exercising the multi-chunk + masked-tail path
    # (time_chunk=16 -> 3 balanced chunks of Tc=14, 2 masked tail steps).
    x2 = jax.random.normal(kx2, (8, 40, D), jnp.float32)
    out2 = jax.block_until_ready(vanilla_rnn_forward(x2, check, time_chunk=16))
    ref2 = _reference(x2, check)
    assert out2.shape == (8, O), out2.shape
    assert jnp.allclose(out2, ref2, atol=3e-2, rtol=3e-2), (
        "mismatch (case 2), max err "
        f"{float(jnp.max(jnp.abs(out2 - ref2)))}")

    print("KERNEL_OK")
</pallas_src>

<mosaic_0001>
module attributes {stable_mosaic.version = 11 : i64} {
  func.func @kernel(%arg0: i32, %arg1: memref<8x2x128xf32, #tpu.memory_space<vmem>>, %arg2: memref<128x128xbf16, #tpu.memory_space<vmem>>, %arg3: memref<128x8xf32, #tpu.memory_space<vmem>>, %arg4: memref<1x8xf32, #tpu.memory_space<vmem>>, %arg5: memref<2x8xf32, #tpu.memory_space<vmem>>, %arg6: memref<2x128xf32, #tpu.memory_space<vmem>>) attributes {dimension_semantics = [#tpu.dimension_semantics<arbitrary>], iteration_bounds = array<i64: 1>, scalar_prefetch = 0 : i64, scratch_operands = 1 : i64, tpu.core_type = #tpu.core_type<tc>, window_params = [{transform_indices = @transform_0, window_bounds = array<i64: 8, 2, 128>}, {pipeline_mode = #tpu.pipeline_mode<synchronous>, transform_indices = @transform_1, window_bounds = array<i64: 128, 128>}, {pipeline_mode = #tpu.pipeline_mode<synchronous>, transform_indices = @transform_2, window_bounds = array<i64: 128, 8>}, {pipeline_mode = #tpu.pipeline_mode<synchronous>, transform_indices = @transform_3, window_bounds = array<i64: 1, 8>}, {pipeline_mode = #tpu.pipeline_mode<synchronous>, transform_indices = @transform_4, window_bounds = array<i64: 2, 8>}]} {
    %c0_i32 = arith.constant 0 : i32
    %0 = arith.cmpi eq, %arg0, %c0_i32 : i32
    %1 = arith.extui %0 : i1 to i32
    %c0_i32_0 = arith.constant 0 : i32
    %2 = arith.cmpi ne, %1, %c0_i32_0 : i32
    scf.if %2 {
      %cst_32 = arith.constant 0.000000e+00 : f32
      %57 = vector.broadcast %cst_32 : f32 to vector<2x128xf32>
      %c0_33 = arith.constant 0 : index
      %c0_34 = arith.constant 0 : index
      %58 = vector.load %arg6[%c0_33, %c0_34] : memref<2x128xf32, #tpu.memory_space<vmem>>, vector<2x128xf32>
      tpu.vector_store %arg6[%c0_33, %c0_34], %57 {strides = array<i32>} : memref<2x128xf32, #tpu.memory_space<vmem>>, vector<2x128xf32>,
    } else {
    }
    %c0 = arith.constant 0 : index
    %c0_1 = arith.constant 0 : index
    %3 = vector.load %arg2[%c0, %c0_1] : memref<128x128xbf16, #tpu.memory_space<vmem>>, vector<128x128xbf16>
    %c0_2 = arith.constant 0 : index
    %c0_3 = arith.constant 0 : index
    %4 = vector.load %arg6[%c0_2, %c0_3] : memref<2x128xf32, #tpu.memory_space<vmem>>, vector<2x128xf32>
    %c0_4 = arith.constant 0 : index
    %c0_5 = arith.constant 0 : index
    %c0_6 = arith.constant 0 : index
    %5 = vector.load %arg1[%c0_4, %c0_5, %c0_6] : memref<8x2x128xf32, #tpu.memory_space<vmem>>, vector<1x2x128xf32>
    %6 = vector.shape_cast %5 : vector<1x2x128xf32> to vector<2x128xf32>
    %7 = arith.truncf %4 : vector<2x128xf32> to vector<2x128xbf16>
    %cst = arith.constant dense<0.000000e+00> : vector<2x128xf32>
    %8 = tpu.matmul %7, %3, %cst {dimension_numbers = #tpu.dot_dimension_numbers<[1], [0], [0], [1], [0, 0, 1, 1], [], []>} : vector<2x128xbf16>, vector<128x128xbf16>, vector<2x128xf32> -> vector<2x128xf32>
    %9 = arith.addf %6, %8 : vector<2x128xf32>
    %10 = math.tanh %9 : vector<2x128xf32>
    %c1 = arith.constant 1 : index
    %c0_7 = arith.constant 0 : index
    %c0_8 = arith.constant 0 : index
    %11 = vector.load %arg1[%c1, %c0_7, %c0_8] : memref<8x2x128xf32, #tpu.memory_space<vmem>>, vector<1x2x128xf32>
    %12 = vector.shape_cast %11 : vector<1x2x128xf32> to vector<2x128xf32>
    %13 = arith.truncf %10 : vector<2x128xf32> to vector<2x128xbf16>
    %cst_9 = arith.constant dense<0.000000e+00> : vector<2x128xf32>
    %14 = tpu.matmul %13, %3, %cst_9 {dimension_numbers = #tpu.dot_dimension_numbers<[1], [0], [0], [1], [0, 0, 1, 1], [], []>} : vector<2x128xbf16>, vector<128x128xbf16>, vector<2x128xf32> -> vector<2x128xf32>
    %15 = arith.addf %12, %14 : vector<2x128xf32>
    %16 = math.tanh %15 : vector<2x128xf32>
    %c2 = arith.constant 2 : index
    %c0_10 = arith.constant 0 : index
    %c0_11 = arith.constant 0 : index
    %17 = vector.load %arg1[%c2, %c0_10, %c0_11] : memref<8x2x128xf32, #tpu.memory_space<vmem>>, vector<1x2x128xf32>
    %18 = vector.shape_cast %17 : vector<1x2x128xf32> to vector<2x128xf32>
    %19 = arith.truncf %16 : vector<2x128xf32> to vector<2x128xbf16>
    %cst_12 = arith.constant dense<0.000000e+00> : vector<2x128xf32>
    %20 = tpu.matmul %19, %3, %cst_12 {dimension_numbers = #tpu.dot_dimension_numbers<[1], [0], [0], [1], [0, 0, 1, 1], [], []>} : vector<2x128xbf16>, vector<128x128xbf16>, vector<2x128xf32> -> vector<2x128xf32>
    %21 = arith.addf %18, %20 : vector<2x128xf32>
    %22 = math.tanh %21 : vector<2x128xf32>
    %c3 = arith.constant 3 : index
    %c0_13 = arith.constant 0 : index
    %c0_14 = arith.constant 0 : index
    %23 = vector.load %arg1[%c3, %c0_13, %c0_14] : memref<8x2x128xf32, #tpu.memory_space<vmem>>, vector<1x2x128xf32>
    %24 = vector.shape_cast %23 : vector<1x2x128xf32> to vector<2x128xf32>
    %25 = arith.truncf %22 : vector<2x128xf32> to vector<2x128xbf16>
    %cst_15 = arith.constant dense<0.000000e+00> : vector<2x128xf32>
    %26 = tpu.matmul %25, %3, %cst_15 {dimension_numbers = #tpu.dot_dimension_numbers<[1], [0], [0], [1], [0, 0, 1, 1], [], []>} : vector<2x128xbf16>, vector<128x128xbf16>, vector<2x128xf32> -> vector<2x128xf32>
    %27 = arith.addf %24, %26 : vector<2x128xf32>
    %28 = math.tanh %27 : vector<2x128xf32>
    %c4 = arith.constant 4 : index
    %c0_16 = arith.constant 0 : index
    %c0_17 = arith.constant 0 : index
    %29 = vector.load %arg1[%c4, %c0_16, %c0_17] : memref<8x2x128xf32, #tpu.memory_space<vmem>>, vector<1x2x128xf32>
    %30 = vector.shape_cast %29 : vector<1x2x128xf32> to vector<2x128xf32>
    %31 = arith.truncf %28 : vector<2x128xf32> to vector<2x128xbf16>
    %cst_18 = arith.constant dense<0.000000e+00> : vector<2x128xf32>
    %32 = tpu.matmul %31, %3, %cst_18 {dimension_numbers = #tpu.dot_dimension_numbers<[1], [0], [0], [1], [0, 0, 1, 1], [], []>} : vector<2x128xbf16>, vector<128x128xbf16>, vector<2x128xf32> -> vector<2x128xf32>
    %33 = arith.addf %30, %32 : vector<2x128xf32>
    %34 = math.tanh %33 : vector<2x128xf32>
    %c5 = arith.constant 5 : index
    %c0_19 = arith.constant 0 : index
    %c0_20 = arith.constant 0 : index
    %35 = vector.load %arg1[%c5, %c0_19, %c0_20] : memref<8x2x128xf32, #tpu.memory_space<vmem>>, vector<1x2x128xf32>
    %36 = vector.shape_cast %35 : vector<1x2x128xf32> to vector<2x128xf32>
    %37 = arith.truncf %34 : vector<2x128xf32> to vector<2x128xbf16>
    %cst_21 = arith.constant dense<0.000000e+00> : vector<2x128xf32>
    %38 = tpu.matmul %37, %3, %cst_21 {dimension_numbers = #tpu.dot_dimension_numbers<[1], [0], [0], [1], [0, 0, 1, 1], [], []>} : vector<2x128xbf16>, vector<128x128xbf16>, vector<2x128xf32> -> vector<2x128xf32>
    %39 = arith.addf %36, %38 : vector<2x128xf32>
    %40 = math.tanh %39 : vector<2x128xf32>
    %c6 = arith.constant 6 : index
    %c0_22 = arith.constant 0 : index
    %c0_23 = arith.constant 0 : index
    %41 = vector.load %arg1[%c6, %c0_22, %c0_23] : memref<8x2x128xf32, #tpu.memory_space<vmem>>, vector<1x2x128xf32>
    %42 = vector.shape_cast %41 : vector<1x2x128xf32> to vector<2x128xf32>
    %43 = arith.truncf %40 : vector<2x128xf32> to vector<2x128xbf16>
    %cst_24 = arith.constant dense<0.000000e+00> : vector<2x128xf32>
    %44 = tpu.matmul %43, %3, %cst_24 {dimension_numbers = #tpu.dot_dimension_numbers<[1], [0], [0], [1], [0, 0, 1, 1], [], []>} : vector<2x128xbf16>, vector<128x128xbf16>, vector<2x128xf32> -> vector<2x128xf32>
    %45 = arith.addf %42, %44 : vector<2x128xf32>
    %46 = math.tanh %45 : vector<2x128xf32>
    %c7 = arith.constant 7 : index
    %c0_25 = arith.constant 0 : index
    %c0_26 = arith.constant 0 : index
    %47 = vector.load %arg1[%c7, %c0_25, %c0_26] : memref<8x2x128xf32, #tpu.memory_space<vmem>>, vector<1x2x128xf32>
    %48 = vector.shape_cast %47 : vector<1x2x128xf32> to vector<2x128xf32>
    %49 = arith.truncf %46 : vector<2x128xf32> to vector<2x128xbf16>
    %cst_27 = arith.constant dense<0.000000e+00> : vector<2x128xf32>
    %50 = tpu.matmul %49, %3, %cst_27 {dimension_numbers = #tpu.dot_dimension_numbers<[1], [0], [0], [1], [0, 0, 1, 1], [], []>} : vector<2x128xbf16>, vector<128x128xbf16>, vector<2x128xf32> -> vector<2x128xf32>
    %51 = arith.addf %48, %50 : vector<2x128xf32>
    %52 = math.tanh %51 : vector<2x128xf32>
    %c0_28 = arith.constant 0 : index
    %c0_29 = arith.constant 0 : index
    %53 = vector.load %arg6[%c0_28, %c0_29] : memref<2x128xf32, #tpu.memory_space<vmem>>, vector<2x128xf32>
    tpu.vector_store %arg6[%c0_28, %c0_29], %52 {strides = array<i32>} : memref<2x128xf32, #tpu.memory_space<vmem>>, vector<2x128xf32>,
    %c0_i32_30 = arith.constant 0 : i32
    %54 = arith.cmpi eq, %arg0, %c0_i32_30 : i32
    %55 = arith.extui %54 : i1 to i32
    %c0_i32_31 = arith.constant 0 : i32
    %56 = arith.cmpi ne, %55, %c0_i32_31 : i32
    scf.if %56 {
      %c0_32 = arith.constant 0 : index
      %c0_33 = arith.constant 0 : index
      %57 = vector.load %arg3[%c0_32, %c0_33] : memref<128x8xf32, #tpu.memory_space<vmem>>, vector<128x8xf32>
      %cst_34 = arith.constant dense<0.000000e+00> : vector<2x8xf32>
      %58 = tpu.matmul %52, %57, %cst_34 {dimension_numbers = #tpu.dot_dimension_numbers<[1], [0], [0], [1], [0, 0, 1, 1], [], []>} : vector<2x128xf32>, vector<128x8xf32>, vector<2x8xf32> -> vector<2x8xf32>
      %c0_35 = arith.constant 0 : index
      %c0_36 = arith.constant 0 : index
      %59 = vector.load %arg4[%c0_35, %c0_36] : memref<1x8xf32, #tpu.memory_space<vmem>>, vector<1x8xf32>
      %60 = vector.broadcast %59 : vector<1x8xf32> to vector<2x8xf32>
      %61 = arith.addf %58, %60 : vector<2x8xf32>
      %62 = math.tanh %61 : vector<2x8xf32>
      %c0_37 = arith.constant 0 : index
      %c0_38 = arith.constant 0 : index
      %63 = vector.load %arg5[%c0_37, %c0_38] : memref<2x8xf32, #tpu.memory_space<vmem>>, vector<2x8xf32>
      tpu.vector_store %arg5[%c0_37, %c0_38], %62 {strides = array<i32>} : memref<2x8xf32, #tpu.memory_space<vmem>>, vector<2x8xf32>,
    } else {
    }
    return
  }
  func.func @transform_0(%arg0: i32) -> (i32, i32, i32) {
    %c0_i32 = arith.constant 0 : i32
    %c0_i32_0 = arith.constant 0 : i32
    %c0_i32_1 = arith.constant 0 : i32
    return %arg0, %c0_i32, %c0_i32_0 : i32, i32, i32
  }
  func.func @transform_1(%arg0: i32) -> (i32, i32) {
    %c0_i32 = arith.constant 0 : i32
    %c0_i32_0 = arith.constant 0 : i32
    %c0_i32_1 = arith.constant 0 : i32
    return %c0_i32, %c0_i32_0 : i32, i32
  }
  func.func @transform_2(%arg0: i32) -> (i32, i32) {
    %c0_i32 = arith.constant 0 : i32
    %c0_i32_0 = arith.constant 0 : i32
    %c0_i32_1 = arith.constant 0 : i32
    return %c0_i32, %c0_i32_0 : i32, i32
  }
  func.func @transform_3(%arg0: i32) -> (i32, i32) {
    %c0_i32 = arith.constant 0 : i32
    %c0_i32_0 = arith.constant 0 : i32
    %c0_i32_1 = arith.constant 0 : i32
    return %c0_i32, %c0_i32_0 : i32, i32
  }
  func.func @transform_4(%arg0: i32) -> (i32, i32) {
    %c0_i32 = arith.constant 0 : i32
    %c0_i32_0 = arith.constant 0 : i32
    %c0_i32_1 = arith.constant 0 : i32
    return %c0_i32, %c0_i32_0 : i32, i32
  }
}

</mosaic_0001>

<llo_original>
// kernel: tpu_custom_call.1
$region0: #{tpu_custom_call.1}
  #allocation0 [shape = 'u32[]', space=smem, size = 0x4, offset = 0x4, fixed_abs, tag = 'smem constant byte address 0x4 - core index']
  #allocation1 [shape = 'u32[144,128]{1,0:T(1,128)}', space=vmem, size = 0x12000, scoped, tag = 'internal scratch']
  #allocation2 [shape = 'f32[2,128]{1,0:T(2,128)}', space=vmem, size = 0x400, scoped, tag = 'scratch operand']
  %s0 = inlined_call_operand.vmem [shape: f32[8,2,128], index: 0, kind: input, shape index: {}]
  %s1 = inlined_call_operand.vmem [shape: bf16[128,128], index: 1, kind: input, shape index: {}]
  %s2 = inlined_call_operand.vmem [shape: f32[128,8], index: 2, kind: input, shape index: {}]
  %s3 = inlined_call_operand.vmem [shape: f32[1,8], index: 3, kind: input, shape index: {}]
  %s4 = inlined_call_operand.hbm [shape: f32[2,8], index: 4, kind: output, shape index: {}]
  %s5 = sld [smem:[#allocation0]]
  $region34: #{tpu_custom_call.1} parent=0
    _
  %s7 = ssub.s32 1, %s5
  %s8 = scalar_select 0, %s7, %s5
  $region1: #{tpu_custom_call.1} parent=0
    #allocation3 [shape = 'u8[1024]{0}', space=vmem, size = 0x400, scoped, tag = 'output window, operand 0, single buffered']
    #allocation4 [shape = 's32[1]{0}', space=sflag, size = 0x4, scoped, tag = 'scoped memory for tpu_custom_call.1']
    %9 = vsyncpa [#allocation4], 0
    // Predicated region
    $region2: #{tpu_custom_call.1} parent=1 // pred_check
      _
    $region3: #{tpu_custom_call.1} parent=1 // pred_check_branch
      %11 = sbr.rel (0) target = $region5
    $region4: #{tpu_custom_call.1} parent=1 // pred_region
      _
    $region5: #{tpu_custom_call.1} parent=1 // pred_fallthru
      _
    // Predicated region
    $region6: #{tpu_custom_call.1} parent=1 // pred_check
      _
    $region7: #{tpu_custom_call.1} parent=1 // pred_check_branch
      %13 = sbr.rel (0) target = $region9
    $region8: #{tpu_custom_call.1} parent=1 // pred_region
      _
    $region9: #{tpu_custom_call.1} parent=1 // pred_fallthru
      _
    // Predicated region
    $region10: #{tpu_custom_call.1} parent=1 // pred_check
      _
    $region11: #{tpu_custom_call.1} parent=1 // pred_check_branch
      %15 = sbr.rel (0) target = $region13
    $region12: #{tpu_custom_call.1} parent=1 // pred_region
      _
    $region13: #{tpu_custom_call.1} parent=1 // pred_fallthru
      _
    // Predicated region
    $region14: #{tpu_custom_call.1} parent=1 // pred_check
      _
    $region15: #{tpu_custom_call.1} parent=1 // pred_check_branch
      %17 = sbr.rel (0) target = $region17
    $region16: #{tpu_custom_call.1} parent=1 // pred_region
      _
    $region17: #{tpu_custom_call.1} parent=1 // pred_fallthru
      _
    %p19 = scmp.eq.s32.totalorder 0, 0
    // Predicated region
    $region18: #{tpu_custom_call.1} parent=1 // pred_check
      %p20 = pneg %p19
    $region19: #{tpu_custom_call.1} parent=1 // pred_check_branch
      %22 = sbr.rel (%p20) target = $region21
    $region20: #{tpu_custom_call.1} parent=1 // pred_region
      %23 = vst [vmem:[#allocation2] sm:$0x3] 0.0
    $region21: #{tpu_custom_call.1} parent=1 // pred_fallthru
      _
    %v24 = vld [vmem:[%s1] sm:$0xf]
    %v25 = vld [vmem:[%s1 + $0x4] sm:$0xf]
    %v26 = vld [vmem:[%s1 + $0x8] sm:$0xf]
    %v27 = vld [vmem:[%s1 + $0xc] sm:$0xf]
    %v28 = vld [vmem:[%s1 + $0x10] sm:$0xf]
    %v29 = vld [vmem:[%s1 + $0x14] sm:$0xf]
    %v30 = vld [vmem:[%s1 + $0x18] sm:$0xf]
    %v31 = vld [vmem:[%s1 + $0x1c] sm:$0xf]
    %v32 = vld [vmem:[%s1 + $0x20] sm:$0xf]
    %v33 = vld [vmem:[%s1 + $0x24] sm:$0xf]
    %v34 = vld [vmem:[%s1 + $0x28] sm:$0xf]
    %v35 = vld [vmem:[%s1 + $0x2c] sm:$0xf]
    %v36 = vld [vmem:[%s1 + $0x30] sm:$0xf]
    %v37 = vld [vmem:[%s1 + $0x34] sm:$0xf]
    %v38 = vld [vmem:[%s1 + $0x38] sm:$0xf]
    %v39 = vld [vmem:[%s1 + $0x3c] sm:$0xf]
    %v40 = vld [vmem:[#allocation2] sm:$0x3]
    %v41 = vld [vmem:[%s0] sm:$0x3]
    %v42 = vpack.c.bf16 %v40, %v40
    %v59 = vunpack.c.l.b16 %v24
    %v60 = vunpack.c.l.b16 %v25
    %v61 = vunpack.c.l.b16 %v26
    %v62 = vunpack.c.l.b16 %v27
    %v63 = vunpack.c.l.b16 %v28
    %v64 = vunpack.c.l.b16 %v29
    %v65 = vunpack.c.l.b16 %v30
    %v66 = vunpack.c.l.b16 %v31
    %v67 = vunpack.c.l.b16 %v32
    %v68 = vunpack.c.l.b16 %v33
    %v69 = vunpack.c.l.b16 %v34
    %v70 = vunpack.c.l.b16 %v35
    %v71 = vunpack.c.l.b16 %v36
    %v72 = vunpack.c.l.b16 %v37
    %v73 = vunpack.c.l.b16 %v38
    %v74 = vunpack.c.l.b16 %v39
    %v75 = vpack.c.b16 %v60, %v59
    %v76 = vpack.c.b16 %v62, %v61
    %v77 = vpack.c.b16 %v64, %v63
    %v78 = vpack.c.b16 %v66, %v65
    %v79 = vpack.c.b16 %v68, %v67
    %v80 = vpack.c.b16 %v70, %v69
    %v81 = vpack.c.b16 %v72, %v71
    %v82 = vpack.c.b16 %v74, %v73
    %91 = vmatprep.subr.bf16.mxu0 0
    %92 = vmatpush1.bf16.msra.mxu0 %v75
    %93 = vmatprep.subr.bf16.mxu0 0
    %94 = vmatpush1.bf16.msra.mxu0 %v76
    %95 = vmatprep.subr.bf16.mxu0 0
    %96 = vmatpush1.bf16.msra.mxu0 %v77
    %97 = vmatprep.subr.bf16.mxu0 0
    %98 = vmatpush1.bf16.msra.mxu0 %v78
    %99 = vmatprep.subr.bf16.mxu0 0
    %100 = vmatpush1.bf16.msra.mxu0 %v79
    %101 = vmatprep.subr.bf16.mxu0 0
    %102 = vmatpush1.bf16.msra.mxu0 %v80
    %103 = vmatprep.subr.bf16.mxu0 0
    %104 = vmatpush1.bf16.msra.mxu0 %v81
    %105 = vmatprep.subr.bf16.mxu0 0
    %106 = vmatpush1.bf16.msra.mxu0 %v82
    %107 = vmatprep.subr.bf16.mxu0 0
    %108 = vmatpush1.bf16.msra.mxu0 0
    %109 = vmatprep.subr.bf16.mxu0 0
    %110 = vmatpush1.bf16.msra.mxu0 0
    %111 = vmatprep.subr.bf16.mxu0 0
    %112 = vmatpush1.bf16.msra.mxu0 0
    %113 = vmatprep.subr.bf16.mxu0 0
    %114 = vmatpush1.bf16.msra.mxu0 0
    %115 = vmatprep.subr.bf16.mxu0 0
    %116 = vmatpush1.bf16.msra.mxu0 0
    %117 = vmatprep.subr.bf16.mxu0 0
    %118 = vmatpush1.bf16.msra.mxu0 0
    %119 = vmatprep.subr.bf16.mxu0 0
    %120 = vmatpush1.bf16.msra.mxu0 0
    %121 = vmatprep.subr.bf16.mxu0 0
    %122 = vmatpush1.bf16.msra.mxu0 0
    %123 = vmatprep.mubr.bf16.mxu0 0
    %124 = vmatmul.mubr.bf16.gmra.mrb[0].mxu0 %v42
    %v125 = vpop.f32.mrb[0].mxu0
    %v126 = vadd.f32 0.0, %v125
    %v127 = vpop.f32.mrb[0].mxu0
    %v128 = vpop.f32.mrb[0].mxu0
    %v129 = vpop.f32.mrb[0].mxu0
    %130 = vdwg.mxu0
    %v131 = vadd.f32 %v41, %v126
    %v132 = vtanh.pop %v131
    %s133 = scalar_lea.vmem %s0, 2
    %v134 = vld [vmem:[%s133] sm:$0x3]
    %v135 = vpack.c.bf16 %v132, %v132
    %136 = vmatprep.subr.bf16.mxu0 0
    %137 = vmatpush1.bf16.msra.mxu0 %v75
    %138 = vmatprep.subr.bf16.mxu0 0
    %139 = vmatpush1.bf16.msra.mxu0 %v76
    %140 = vmatprep.subr.bf16.mxu0 0
    %141 = vmatpush1.bf16.msra.mxu0 %v77
    %142 = vmatprep.subr.bf16.mxu0 0
    %143 = vmatpush1.bf16.msra.mxu0 %v78
    %144 = vmatprep.subr.bf16.mxu0 0
    %145 = vmatpush1.bf16.msra.mxu0 %v79
    %146 = vmatprep.subr.bf16.mxu0 0
    %147 = vmatpush1.bf16.msra.mxu0 %v80
    %148 = vmatprep.subr.bf16.mxu0 0
    %149 = vmatpush1.bf16.msra.mxu0 %v81
    %150 = vmatprep.subr.bf16.mxu0 0
    %151 = vmatpush1.bf16.msra.mxu0 %v82
    %152 = vmatprep.subr.bf16.mxu0 0
    %153 = vmatpush1.bf16.msra.mxu0 0
    %154 = vmatprep.subr.bf16.mxu0 0
    %155 = vmatpush1.bf16.msra.mxu0 0
    %156 = vmatprep.subr.bf16.mxu0 0
    %157 = vmatpush1.bf16.msra.mxu0 0
    %158 = vmatprep.subr.bf16.mxu0 0
    %159 = vmatpush1.bf16.msra.mxu0 0
    %160 = vmatprep.subr.bf16.mxu0 0
    %161 = vmatpush1.bf16.msra.mxu0 0
    %162 = vmatprep.subr.bf16.mxu0 0
    %163 = vmatpush1.bf16.msra.mxu0 0
    %164 = vmatprep.subr.bf16.mxu0 0
    %165 = vmatpush1.bf16.msra.mxu0 0
    %166 = vmatprep.subr.bf16.mxu0 0
    %167 = vmatpush1.bf16.msra.mxu0 0
    %168 = vmatprep.mubr.bf16.mxu0 0
    %169 = vmatmul.mubr.bf16.gmra.mrb[0].mxu0 %v135
    %v170 = vpop.f32.mrb[0].mxu0
    %v171 = vadd.f32 0.0, %v170
    %v172 = vpop.f32.mrb[0].mxu0
    %v173 = vpop.f32.mrb[0].mxu0
    %v174 = vpop.f32.mrb[0].mxu0
    %175 = vdwg.mxu0
    %v176 = vadd.f32 %v134, %v171
    %v177 = vtanh.pop %v176
    %s178 = scalar_lea.vmem %s0, 4
    %v179 = vld [vmem:[%s178] sm:$0x3]
    %v180 = vpack.c.bf16 %v177, %v177
    %181 = vmatprep.subr.bf16.mxu0 0
    %182 = vmatpush1.bf16.msra.mxu0 %v75
    %183 = vmatprep.subr.bf16.mxu0 0
    %184 = vmatpush1.bf16.msra.mxu0 %v76
    %185 = vmatprep.subr.bf16.mxu0 0
    %186 = vmatpush1.bf16.msra.mxu0 %v77
    %187 = vmatprep.subr.bf16.mxu0 0
    %188 = vmatpush1.bf16.msra.mxu0 %v78
    %189 = vmatprep.subr.bf16.mxu0 0
    %190 = vmatpush1.bf16.msra.mxu0 %v79
    %191 = vmatprep.subr.bf16.mxu0 0
    %192 = vmatpush1.bf16.msra.mxu0 %v80
    %193 = vmatprep.subr.bf16.mxu0 0
    %194 = vmatpush1.bf16.msra.mxu0 %v81
    %195 = vmatprep.subr.bf16.mxu0 0
    %196 = vmatpush1.bf16.msra.mxu0 %v82
    %197 = vmatprep.subr.bf16.mxu0 0
    %198 = vmatpush1.bf16.msra.mxu0 0
    %199 = vmatprep.subr.bf16.mxu0 0
    %200 = vmatpush1.bf16.msra.mxu0 0
    %201 = vmatprep.subr.bf16.mxu0 0
    %202 = vmatpush1.bf16.msra.mxu0 0
    %203 = vmatprep.subr.bf16.mxu0 0
    %204 = vmatpush1.bf16.msra.mxu0 0
    %205 = vmatprep.subr.bf16.mxu0 0
    %206 = vmatpush1.bf16.msra.mxu0 0
    %207 = vmatprep.subr.bf16.mxu0 0
    %208 = vmatpush1.bf16.msra.mxu0 0
    %209 = vmatprep.subr.bf16.mxu0 0
    %210 = vmatpush1.bf16.msra.mxu0 0
    %211 = vmatprep.subr.bf16.mxu0 0
    %212 = vmatpush1.bf16.msra.mxu0 0
    %213 = vmatprep.mubr.bf16.mxu0 0
    %214 = vmatmul.mubr.bf16.gmra.mrb[0].mxu0 %v180
    %v215 = vpop.f32.mrb[0].mxu0
    %v216 = vadd.f32 0.0, %v215
    %v217 = vpop.f32.mrb[0].mxu0
    %v218 = vpop.f32.mrb[0].mxu0
    %v219 = vpop.f32.mrb[0].mxu0
    %220 = vdwg.mxu0
    %v221 = vadd.f32 %v179, %v216
    %v222 = vtanh.pop %v221
    %s223 = scalar_lea.vmem %s0, 6
    %v224 = vld [vmem:[%s223] sm:$0x3]
    %v225 = vpack.c.bf16 %v222, %v222
    %226 = vmatprep.subr.bf16.mxu0 0
    %227 = vmatpush1.bf16.msra.mxu0 %v75
    %228 = vmatprep.subr.bf16.mxu0 0
    %229 = vmatpush1.bf16.msra.mxu0 %v76
    %230 = vmatprep.subr.bf16.mxu0 0
    %231 = vmatpush1.bf16.msra.mxu0 %v77
    %232 = vmatprep.subr.bf16.mxu0 0
    %233 = vmatpush1.bf16.msra.mxu0 %v78
    %234 = vmatprep.subr.bf16.mxu0 0
    %235 = vmatpush1.bf16.msra.mxu0 %v79
    %236 = vmatprep.subr.bf16.mxu0 0
    %237 = vmatpush1.bf16.msra.mxu0 %v80
    %238 = vmatprep.subr.bf16.mxu0 0
    %239 = vmatpush1.bf16.msra.mxu0 %v81
    %240 = vmatprep.subr.bf16.mxu0 0
    %241 = vmatpush1.bf16.msra.mxu0 %v82
    %242 = vmatprep.subr.bf16.mxu0 0
    %243 = vmatpush1.bf16.msra.mxu0 0
    %244 = vmatprep.subr.bf16.mxu0 0
    %245 = vmatpush1.bf16.msra.mxu0 0
    %246 = vmatprep.subr.bf16.mxu0 0
    %247 = vmatpush1.bf16.msra.mxu0 0
    %248 = vmatprep.subr.bf16.mxu0 0
    %249 = vmatpush1.bf16.msra.mxu0 0
    %250 = vmatprep.subr.bf16.mxu0 0
    %251 = vmatpush1.bf16.msra.mxu0 0
    %252 = vmatprep.subr.bf16.mxu0 0
    %253 = vmatpush1.bf16.msra.mxu0 0
    %254 = vmatprep.subr.bf16.mxu0 0
    %255 = vmatpush1.bf16.msra.mxu0 0
    %256 = vmatprep.subr.bf16.mxu0 0
    %257 = vmatpush1.bf16.msra.mxu0 0
    %258 = vmatprep.mubr.bf16.mxu0 0
    %259 = vmatmul.mubr.bf16.gmra.mrb[0].mxu0 %v225
    %v260 = vpop.f32.mrb[0].mxu0
    %v261 = vadd.f32 0.0, %v260
    %v262 = vpop.f32.mrb[0].mxu0
    %v263 = vpop.f32.mrb[0].mxu0
    %v264 = vpop.f32.mrb[0].mxu0
    %265 = vdwg.mxu0
    %v266 = vadd.f32 %v224, %v261
    %v267 = vtanh.pop %v266
    %s268 = scalar_lea.vmem %s0, 8
    %v269 = vld [vmem:[%s268] sm:$0x3]
    %v270 = vpack.c.bf16 %v267, %v267
    %271 = vmatprep.subr.bf16.mxu0 0
    %272 = vmatpush1.bf16.msra.mxu0 %v75
    %273 = vmatprep.subr.bf16.mxu0 0
    %274 = vmatpush1.bf16.msra.mxu0 %v76
    %275 = vmatprep.subr.bf16.mxu0 0
    %276 = vmatpush1.bf16.msra.mxu0 %v77
    %277 = vmatprep.subr.bf16.mxu0 0
    %278 = vmatpush1.bf16.msra.mxu0 %v78
    %279 = vmatprep.subr.bf16.mxu0 0
    %280 = vmatpush1.bf16.msra.mxu0 %v79
    %281 = vmatprep.subr.bf16.mxu0 0
    %282 = vmatpush1.bf16.msra.mxu0 %v80
    %283 = vmatprep.subr.bf16.mxu0 0
    %284 = vmatpush1.bf16.msra.mxu0 %v81
    %285 = vmatprep.subr.bf16.mxu0 0
    %286 = vmatpush1.bf16.msra.mxu0 %v82
    %287 = vmatprep.subr.bf16.mxu0 0
    %288 = vmatpush1.bf16.msra.mxu0 0
    %289 = vmatprep.subr.bf16.mxu0 0
    %290 = vmatpush1.bf16.msra.mxu0 0
    %291 = vmatprep.subr.bf16.mxu0 0
    %292 = vmatpush1.bf16.msra.mxu0 0
    %293 = vmatprep.subr.bf16.mxu0 0
    %294 = vmatpush1.bf16.msra.mxu0 0
    %295 = vmatprep.subr.bf16.mxu0 0
    %296 = vmatpush1.bf16.msra.mxu0 0
    %297 = vmatprep.subr.bf16.mxu0 0
    %298 = vmatpush1.bf16.msra.mxu0 0
    %299 = vmatprep.subr.bf16.mxu0 0
    %300 = vmatpush1.bf16.msra.mxu0 0
    %301 = vmatprep.subr.bf16.mxu0 0
    %302 = vmatpush1.bf16.msra.mxu0 0
    %303 = vmatprep.mubr.bf16.mxu0 0
    %304 = vmatmul.mubr.bf16.gmra.mrb[0].mxu0 %v270
    %v305 = vpop.f32.mrb[0].mxu0
    %v306 = vadd.f32 0.0, %v305
    %v307 = vpop.f32.mrb[0].mxu0
    %v308 = vpop.f32.mrb[0].mxu0
    %v309 = vpop.f32.mrb[0].mxu0
    %310 = vdwg.mxu0
    %v311 = vadd.f32 %v269, %v306
    %v312 = vtanh.pop %v311
    %s313 = scalar_lea.vmem %s0, 10
    %v314 = vld [vmem:[%s313] sm:$0x3]
    %v315 = vpack.c.bf16 %v312, %v312
    %316 = vmatprep.subr.bf16.mxu0 0
    %317 = vmatpush1.bf16.msra.mxu0 %v75
    %318 = vmatprep.subr.bf16.mxu0 0
    %319 = vmatpush1.bf16.msra.mxu0 %v76
    %320 = vmatprep.subr.bf16.mxu0 0
    %321 = vmatpush1.bf16.msra.mxu0 %v77
    %322 = vmatprep.subr.bf16.mxu0 0
    %323 = vmatpush1.bf16.msra.mxu0 %v78
    %324 = vmatprep.subr.bf16.mxu0 0
    %325 = vmatpush1.bf16.msra.mxu0 %v79
    %326 = vmatprep.subr.bf16.mxu0 0
    %327 = vmatpush1.bf16.msra.mxu0 %v80
    %328 = vmatprep.subr.bf16.mxu0 0
    %329 = vmatpush1.bf16.msra.mxu0 %v81
    %330 = vmatprep.subr.bf16.mxu0 0
    %331 = vmatpush1.bf16.msra.mxu0 %v82
    %332 = vmatprep.subr.bf16.mxu0 0
    %333 = vmatpush1.bf16.msra.mxu0 0
    %334 = vmatprep.subr.bf16.mxu0 0
    %335 = vmatpush1.bf16.msra.mxu0 0
    %336 = vmatprep.subr.bf16.mxu0 0
    %337 = vmatpush1.bf16.msra.mxu0 0
    %338 = vmatprep.subr.bf16.mxu0 0
    %339 = vmatpush1.bf16.msra.mxu0 0
    %340 = vmatprep.subr.bf16.mxu0 0
    %341 = vmatpush1.bf16.msra.mxu0 0
    %342 = vmatprep.subr.bf16.mxu0 0
    %343 = vmatpush1.bf16.msra.mxu0 0
    %344 = vmatprep.subr.bf16.mxu0 0
    %345 = vmatpush1.bf16.msra.mxu0 0
    %346 = vmatprep.subr.bf16.mxu0 0
    %347 = vmatpush1.bf16.msra.mxu0 0
    %348 = vmatprep.mubr.bf16.mxu0 0
    %349 = vmatmul.mubr.bf16.gmra.mrb[0].mxu0 %v315
    %v350 = vpop.f32.mrb[0].mxu0
    %v351 = vadd.f32 0.0, %v350
    %v352 = vpop.f32.mrb[0].mxu0
    %v353 = vpop.f32.mrb[0].mxu0
    %v354 = vpop.f32.mrb[0].mxu0
    %355 = vdwg.mxu0
    %v356 = vadd.f32 %v314, %v351
    %v357 = vtanh.pop %v356
    %s358 = scalar_lea.vmem %s0, 12
    %v359 = vld [vmem:[%s358] sm:$0x3]
    %v360 = vpack.c.bf16 %v357, %v357
    %361 = vmatprep.subr.bf16.mxu0 0
    %362 = vmatpush1.bf16.msra.mxu0 %v75
    %363 = vmatprep.subr.bf16.mxu0 0
    %364 = vmatpush1.bf16.msra.mxu0 %v76
    %365 = vmatprep.subr.bf16.mxu0 0
    %366 = vmatpush1.bf16.msra.mxu0 %v77
    %367 = vmatprep.subr.bf16.mxu0 0
    %368 = vmatpush1.bf16.msra.mxu0 %v78
    %369 = vmatprep.subr.bf16.mxu0 0
    %370 = vmatpush1.bf16.msra.mxu0 %v79
    %371 = vmatprep.subr.bf16.mxu0 0
    %372 = vmatpush1.bf16.msra.mxu0 %v80
    %373 = vmatprep.subr.bf16.mxu0 0
    %374 = vmatpush1.bf16.msra.mxu0 %v81
    %375 = vmatprep.subr.bf16.mxu0 0
    %376 = vmatpush1.bf16.msra.mxu0 %v82
    %377 = vmatprep.subr.bf16.mxu0 0
    %378 = vmatpush1.bf16.msra.mxu0 0
    %379 = vmatprep.subr.bf16.mxu0 0
    %380 = vmatpush1.bf16.msra.mxu0 0
    %381 = vmatprep.subr.bf16.mxu0 0
    %382 = vmatpush1.bf16.msra.mxu0 0
    %383 = vmatprep.subr.bf16.mxu0 0
    %384 = vmatpush1.bf16.msra.mxu0 0
    %385 = vmatprep.subr.bf16.mxu0 0
    %386 = vmatpush1.bf16.msra.mxu0 0
    %387 = vmatprep.subr.bf16.mxu0 0
    %388 = vmatpush1.bf16.msra.mxu0 0
    %389 = vmatprep.subr.bf16.mxu0 0
    %390 = vmatpush1.bf16.msra.mxu0 0
    %391 = vmatprep.subr.bf16.mxu0 0
    %392 = vmatpush1.bf16.msra.mxu0 0
    %393 = vmatprep.mubr.bf16.mxu0 0
    %394 = vmatmul.mubr.bf16.gmra.mrb[0].mxu0 %v360
    %v395 = vpop.f32.mrb[0].mxu0
    %v396 = vadd.f32 0.0, %v395
    %v397 = vpop.f32.mrb[0].mxu0
    %v398 = vpop.f32.mrb[0].mxu0
    %v399 = vpop.f32.mrb[0].mxu0
    %400 = vdwg.mxu0
    %v401 = vadd.f32 %v359, %v396
    %v402 = vtanh.pop %v401
    %s403 = scalar_lea.vmem %s0, 14
    %v404 = vld [vmem:[%s403] sm:$0x3]
    %v405 = vpack.c.bf16 %v402, %v402
    %406 = vmatprep.subr.bf16.mxu0 0
    %407 = vmatpush1.bf16.msra.mxu0 %v75
    %408 = vmatprep.subr.bf16.mxu0 0
    %409 = vmatpush1.bf16.msra.mxu0 %v76
    %410 = vmatprep.subr.bf16.mxu0 0
    %411 = vmatpush1.bf16.msra.mxu0 %v77
    %412 = vmatprep.subr.bf16.mxu0 0
    %413 = vmatpush1.bf16.msra.mxu0 %v78
    %414 = vmatprep.subr.bf16.mxu0 0
    %415 = vmatpush1.bf16.msra.mxu0 %v79
    %416 = vmatprep.subr.bf16.mxu0 0
    %417 = vmatpush1.bf16.msra.mxu0 %v80
    %418 = vmatprep.subr.bf16.mxu0 0
    %419 = vmatpush1.bf16.msra.mxu0 %v81
    %420 = vmatprep.subr.bf16.mxu0 0
    %421 = vmatpush1.bf16.msra.mxu0 %v82
    %422 = vmatprep.subr.bf16.mxu0 0
    %423 = vmatpush1.bf16.msra.mxu0 0
    %424 = vmatprep.subr.bf16.mxu0 0
    %425 = vmatpush1.bf16.msra.mxu0 0
    %426 = vmatprep.subr.bf16.mxu0 0
    %427 = vmatpush1.bf16.msra.mxu0 0
    %428 = vmatprep.subr.bf16.mxu0 0
    %429 = vmatpush1.bf16.msra.mxu0 0
    %430 = vmatprep.subr.bf16.mxu0 0
    %431 = vmatpush1.bf16.msra.mxu0 0
    %432 = vmatprep.subr.bf16.mxu0 0
    %433 = vmatpush1.bf16.msra.mxu0 0
    %434 = vmatprep.subr.bf16.mxu0 0
    %435 = vmatpush1.bf16.msra.mxu0 0
    %436 = vmatprep.subr.bf16.mxu0 0
    %437 = vmatpush1.bf16.msra.mxu0 0
    %438 = vmatprep.mubr.bf16.mxu0 0
    %439 = vmatmul.mubr.bf16.gmra.mrb[0].mxu0 %v405
    %v440 = vpop.f32.mrb[0].mxu0
    %v441 = vadd.f32 0.0, %v440
    %v442 = vpop.f32.mrb[0].mxu0
    %v443 = vpop.f32.mrb[0].mxu0
    %v444 = vpop.f32.mrb[0].mxu0
    %445 = vdwg.mxu0
    %v446 = vadd.f32 %v404, %v441
    %v447 = vtanh.pop %v446
    %448 = vst [vmem:[#allocation2] sm:$0x3] %v447
    // Predicated region
    $region22: #{tpu_custom_call.1} parent=1 // pred_check
      %p449 = pneg %p19
    $region23: #{tpu_custom_call.1} parent=1 // pred_check_branch
      %451 = sbr.rel (%p449) target = $region25
    $region24: #{tpu_custom_call.1} parent=1 // pred_region
      %v452 = vld [vmem:[%s2] sm:$0xff]
      %v453 = vld [vmem:[%s2 + $0x8] sm:$0xff]
      %v454 = vld [vmem:[%s2 + $0x10] sm:$0xff]
      %v455 = vld [vmem:[%s2 + $0x18] sm:$0xff]
      %v456 = vld [vmem:[%s2 + $0x20] sm:$0xff]
      %v457 = vld [vmem:[%s2 + $0x28] sm:$0xff]
      %v458 = vld [vmem:[%s2 + $0x30] sm:$0xff]
      %v459 = vld [vmem:[%s2 + $0x38] sm:$0xff]
      %v460 = vld [vmem:[%s2 + $0x40] sm:$0xff]
      %v461 = vld [vmem:[%s2 + $0x48] sm:$0xff]
      %v462 = vld [vmem:[%s2 + $0x50] sm:$0xff]
      %v463 = vld [vmem:[%s2 + $0x58] sm:$0xff]
      %v464 = vld [vmem:[%s2 + $0x60] sm:$0xff]
      %v465 = vld [vmem:[%s2 + $0x68] sm:$0xff]
      %v466 = vld [vmem:[%s2 + $0x70] sm:$0xff]
      %v467 = vld [vmem:[%s2 + $0x78] sm:$0xff]
      %v468 = vld [vmem:[%s3] sm:$0x1]
      %v470 = vlaneseq
      %v471 = vshrl.u32 %v470, 7
      %v472 = vsub.s32 0, %v471
      %v473 = vrot.slane %v468, %v472
      %475 = vmatprep.subr.mxu0 0.0
      %476 = vmatpush1.msra.mxu0 %v452
      %477 = vmatprep.subr.mxu0 0.0
      %478 = vmatpush1.msra.mxu0 %v453
      %479 = vmatprep.subr.mxu0 0.0
      %480 = vmatpush1.msra.mxu0 %v454
      %481 = vmatprep.subr.mxu0 0.0
      %482 = vmatpush1.msra.mxu0 %v455
      %483 = vmatprep.subr.mxu0 0.0
      %484 = vmatpush1.msra.mxu0 %v456
      %485 = vmatprep.subr.mxu0 0.0
      %486 = vmatpush1.msra.mxu0 %v457
      %487 = vmatprep.subr.mxu0 0.0
      %488 = vmatpush1.msra.mxu0 %v458
      %489 = vmatprep.subr.mxu0 0.0
      %490 = vmatpush1.msra.mxu0 %v459
      %491 = vmatprep.subr.mxu0 0.0
      %492 = vmatpush1.msra.mxu0 %v460
      %493 = vmatprep.subr.mxu0 0.0
      %494 = vmatpush1.msra.mxu0 %v461
      %495 = vmatprep.subr.mxu0 0.0
      %496 = vmatpush1.msra.mxu0 %v462
      %497 = vmatprep.subr.mxu0 0.0
      %498 = vmatpush1.msra.mxu0 %v463
      %499 = vmatprep.subr.mxu0 0.0
      %500 = vmatpush1.msra.mxu0 %v464
      %501 = vmatprep.subr.mxu0 0.0
      %502 = vmatpush1.msra.mxu0 %v465
      %503 = vmatprep.subr.mxu0 0.0
      %504 = vmatpush1.msra.mxu0 %v466
      %505 = vmatprep.subr.mxu0 0.0
      %506 = vmatpush1.msra.mxu0 %v467
      %507 = vmatprep.subr.mxu0 0.0
      %508 = vmatpush1.msra.mxu0 0.0
      %509 = vmatprep.subr.mxu0 0.0
      %510 = vmatpush1.msra.mxu0 0.0
      %511 = vmatprep.subr.mxu0 0.0
      %512 = vmatpush1.msra.mxu0 0.0
      %513 = vmatprep.subr.mxu0 0.0
      %514 = vmatpush1.msra.mxu0 0.0
      %515 = vmatprep.subr.mxu0 0.0
      %516 = vmatpush1.msra.mxu0 0.0
      %517 = vmatprep.subr.mxu0 0.0
      %518 = vmatpush1.msra.mxu0 0.0
      %519 = vmatprep.subr.mxu0 0.0
      %520 = vmatpush1.msra.mxu0 0.0
      %521 = vmatprep.subr.mxu0 0.0
      %522 = vmatpush1.msra.mxu0 0.0
      %523 = vmatprep.subr.mxu0 0.0
      %524 = vmatpush1.msra.mxu0 0.0
      %525 = vmatprep.subr.mxu0 0.0
      %526 = vmatpush1.msra.mxu0 0.0
      %527 = vmatprep.subr.mxu0 0.0
      %528 = vmatpush1.msra.mxu0 0.0
      %529 = vmatprep.subr.mxu0 0.0
      %530 = vmatpush1.msra.mxu0 0.0
      %531 = vmatprep.subr.mxu0 0.0
      %532 = vmatpush1.msra.mxu0 0.0
      %533 = vmatprep.subr.mxu0 0.0
      %534 = vmatpush1.msra.mxu0 0.0
      %535 = vmatprep.subr.mxu0 0.0
      %536 = vmatpush1.msra.mxu0 0.0
      %537 = vmatprep.subr.mxu0 0.0
      %538 = vmatpush1.msra.mxu0 0.0
      %539 = vmatprep.mubr.f32.mxu0 0.0
      %540 = vmatmul.mubr.f32.gmra.mrb[0].mxu0 %v447
      %v541 = vpop.f32.mrb[0].mxu0
      %v542 = vadd.f32 %v473, %v541
      %v543 = vpop.f32.mrb[0].mxu0
      %544 = vdwg.mxu0
      %v545 = vtanh.pop %v542
      %vm546 = vcmask 58368
      %547 = vst.msk [vmem:[#allocation3] sm:$0x3] %vm546, %v545
    $region25: #{tpu_custom_call.1} parent=1 // pred_fallthru
      _
    // Predicated region
    $region26: #{tpu_custom_call.1} parent=1 // pred_check
      _
    $region27: #{tpu_custom_call.1} parent=1 // pred_check_branch
      %549 = sbr.rel (0) target = $region29
    $region28: #{tpu_custom_call.1} parent=1 // pred_region
      %s551 = ssub.s32 32, 32
      %552 = vsyncadd [#allocation4], %s551
      %s554 = sshll.u32 [#allocation3], 4
      %s555 = int_to_ptr.vmem [resolvable:$true] %s554
      %557 = dma.vmem_to_hbm [thread:$0]  %s555, 32, %s4, [#allocation4]
    $region29: #{tpu_custom_call.1} parent=1 // pred_fallthru
      _
    // Predicated region
    $region30: #{tpu_custom_call.1} parent=1 // pred_check
      _
    $region31: #{tpu_custom_call.1} parent=1 // pred_check_branch
      %559 = sbr.rel (0) target = $region33
    $region32: #{tpu_custom_call.1} parent=1 // pred_region
      %560 = dma.done [#allocation4], 32
    $region33: #{tpu_custom_call.1} parent=1 // pred_fallthru
      _
    %561 = vsyncpa [#allocation4], 1

</llo_original>
